<compile_context>
chip_gen: v7x
topology: tpu7x:2x2x1
jax: 0.10.0
libtpu: 0.0.40
codegen_flags: <defaults>
</compile_context>

<pallas_src>
import jax
import jax.numpy as jnp
from jax.experimental import pallas as pl
from jax.experimental.pallas import tpu as pltpu


def particle_gnn_kernel(x_ref, adj_ref, w1_ref, w2_ref, o_ref):
    # Per-grid-step block shapes:
    #   x_ref:   (BG, N, C_IN)   adj_ref: (BG, N, N)
    #   w1_ref:  (C_IN, H)       w2_ref:  (H, C_OUT)
    #   o_ref:   (1, BG, C_OUT)
    x = x_ref[...]            # (BG, N, C_IN)
    adj = adj_ref[...]        # (BG, N, N)
    bg, n, c_in = x.shape

    # A_hat = adj + I applied implicitly:
    #   D_hat_diag = sum(adj, axis=-1) + 1 ;  A_hat @ S = adj @ S + S
    d = jnp.sum(adj, axis=2, keepdims=True) + 1.0       # (BG, N, 1), >= 1
    d_inv_sqrt = jax.lax.rsqrt(d)                        # EUP

    def propagate(s):
        # A_norm @ s = d^{-1/2} * (A_hat @ (d^{-1/2} * s)), batched over graphs.
        tmp = d_inv_sqrt * s
        prop = jnp.einsum("bij,bjc->bic", adj, tmp,
                          preferred_element_type=jnp.float32) + tmp
        return d_inv_sqrt * prop

    # Layer 1: propagate on the narrow [*, C_IN] operand first, then one batched
    # weight matmul across all graphs.  relu(A_norm @ (x @ W1)) == relu((A_norm @ x) @ W1)
    p1 = propagate(x).reshape(bg * n, c_in)
    h = jnp.maximum(
        jnp.dot(p1, w1_ref[...], preferred_element_type=jnp.float32), 0.0)

    # F.dropout(p=0.1, training=False) -> identity in eval mode.

    # Layer 2: transform first (one batched matmul), then propagate on [*, C_OUT].
    support = jnp.dot(h, w2_ref[...], preferred_element_type=jnp.float32)
    support = support.reshape(bg, n, -1)
    h2 = jnp.maximum(propagate(support), 0.0)            # (BG, N, C_OUT)

    # torch.mean(x, dim=0).unsqueeze(0) -> one row per graph; one slab per block.
    o_ref[0] = jnp.mean(h2, axis=1)                      # (BG, C_OUT)


def particle_gnn_forward(x, adj, w1, w2, *, num_blocks=None):
    """x: [B, N, C_in], adj: [B, N, N], w1: [C_in, H], w2: [H, C_out] -> [B, C_out].

    Weights are stored as [in, out] (i.e. PyTorch Linear weight transposed).
    Row b of the result equals the PyTorch ParticleGNN output for graph b.
    """
    B, N, C_IN = x.shape
    H = w1.shape[1]
    C_OUT = w2.shape[1]

    # Two grid steps keeps both v7x TensorCores busy; on v5e/v6e the extra step
    # is a negligible ~0.35 us.  The batch is otherwise folded into the block.
    if num_blocks is None:
        num_blocks = 2 if B >= 2 else 1
    BG = pl.cdiv(B, num_blocks)
    Bp = BG * num_blocks
    if Bp != B:
        # Zero-pad the batch: zero x + zero adj graphs produce zero output rows
        # (d==1 everywhere), which are sliced off below.
        x = jnp.pad(x, ((0, Bp - B), (0, 0), (0, 0)))
        adj = jnp.pad(adj, ((0, Bp - B), (0, 0), (0, 0)))

    flops = 2 * Bp * N * (N * C_IN + C_IN * H + H * C_OUT + N * C_OUT)
    bytes_accessed = 4 * (Bp * (N * C_IN + N * N + C_OUT) + C_IN * H + H * C_OUT)

    out = pl.pallas_call(
        particle_gnn_kernel,
        grid=(num_blocks,),
        out_shape=jax.ShapeDtypeStruct((num_blocks, BG, C_OUT), jnp.float32),
        in_specs=[
            pl.BlockSpec((BG, N, C_IN), lambda g: (g, 0, 0)),
            pl.BlockSpec((BG, N, N), lambda g: (g, 0, 0)),
            pl.BlockSpec((C_IN, H), lambda g: (0, 0)),
            pl.BlockSpec((H, C_OUT), lambda g: (0, 0)),
        ],
        out_specs=pl.BlockSpec((1, BG, C_OUT), lambda g: (g, 0, 0)),
        compiler_params=pltpu.CompilerParams(
            dimension_semantics=("parallel",)),
        cost_estimate=pl.CostEstimate(
            flops=flops, transcendentals=Bp * N, bytes_accessed=bytes_accessed),
    )(x, adj, w1, w2)
    return out.reshape(Bp, C_OUT)[:B]


def reference_forward(x, adj, w1, w2):
    """Pure-JAX reference mirroring the PyTorch code path exactly, vmapped over B."""

    def single(xg, ag):
        n = ag.shape[0]

        def conv(h, w):
            a_hat = ag + jnp.eye(n, dtype=ag.dtype)
            d = jnp.sum(a_hat, axis=1)
            d_inv_sqrt = jnp.diag(jnp.power(d, -0.5))
            a_norm = d_inv_sqrt @ a_hat @ d_inv_sqrt
            return jax.nn.relu(a_norm @ (h @ w))

        h = conv(xg, w1)
        h = conv(h, w2)          # dropout is identity in eval mode
        return jnp.mean(h, axis=0)

    return jax.vmap(single)(x, adj)   # [B, C_OUT]


if __name__ == "__main__":
    # Small shapes: B=4 graphs, N=8 particles, in_channels=4, hidden=32, out=16.
    B, N, C_IN, HIDDEN, C_OUT = 4, 8, 4, 32, 16

    key = jax.random.PRNGKey(0)
    kx, kadj, kw1, kw2 = jax.random.split(key, 4)

    x = jax.random.normal(kx, (B, N, C_IN), dtype=jnp.float32)
    # Symmetric 0/1 adjacency without self loops, per graph.
    a = (jax.random.uniform(kadj, (B, N, N)) > 0.5).astype(jnp.float32)
    tri = jnp.triu(a, 1)
    adj = tri + jnp.transpose(tri, (0, 2, 1))

    # Deterministic weight init (synthetic; stored as [in, out] = PyTorch W^T).
    w1 = jax.random.normal(kw1, (C_IN, HIDDEN), dtype=jnp.float32) * 0.1
    w2 = jax.random.normal(kw2, (HIDDEN, C_OUT), dtype=jnp.float32) * 0.1

    out = jax.block_until_ready(particle_gnn_forward(x, adj, w1, w2))

    ref = reference_forward(x, adj, w1, w2)
    assert out.shape == (B, C_OUT), out.shape
    assert jnp.allclose(out, ref, atol=1e-5, rtol=1e-5), float(jnp.max(jnp.abs(out - ref)))

    print("KERNEL_OK")
</pallas_src>

<mosaic_0001>
module attributes {stable_mosaic.version = 11 : i64} {
  func.func @particle_gnn_kernel(%arg0: i32, %arg1: memref<2x8x4xf32, #tpu.memory_space<vmem>>, %arg2: memref<2x8x8xf32, #tpu.memory_space<vmem>>, %arg3: memref<4x32xf32, #tpu.memory_space<vmem>>, %arg4: memref<32x16xf32, #tpu.memory_space<vmem>>, %arg5: memref<1x2x16xf32, #tpu.memory_space<vmem>>) attributes {dimension_semantics = [#tpu.dimension_semantics<parallel>], iteration_bounds = array<i64: 2>, scalar_prefetch = 0 : i64, scratch_operands = 0 : i64, tpu.core_type = #tpu.core_type<tc>, window_params = [{transform_indices = @transform_0, window_bounds = array<i64: 2, 8, 4>}, {transform_indices = @transform_1, window_bounds = array<i64: 2, 8, 8>}, {pipeline_mode = #tpu.pipeline_mode<synchronous>, transform_indices = @transform_2, window_bounds = array<i64: 4, 32>}, {pipeline_mode = #tpu.pipeline_mode<synchronous>, transform_indices = @transform_3, window_bounds = array<i64: 32, 16>}, {transform_indices = @transform_4, window_bounds = array<i64: 1, 2, 16>}]} {
    %c0 = arith.constant 0 : index
    %c0_0 = arith.constant 0 : index
    %c0_1 = arith.constant 0 : index
    %0 = vector.load %arg1[%c0, %c0_0, %c0_1] : memref<2x8x4xf32, #tpu.memory_space<vmem>>, vector<2x8x4xf32>
    %c0_2 = arith.constant 0 : index
    %c0_3 = arith.constant 0 : index
    %c0_4 = arith.constant 0 : index
    %1 = vector.load %arg2[%c0_2, %c0_3, %c0_4] : memref<2x8x8xf32, #tpu.memory_space<vmem>>, vector<2x8x8xf32>
    %cst = arith.constant dense<0.000000e+00> : vector<2x8xf32>
    %2 = vector.multi_reduction <add>, %1, %cst [2] : vector<2x8x8xf32> to vector<2x8xf32>
    %3 = vector.shape_cast %2 : vector<2x8xf32> to vector<2x8x1xf32>
    %cst_5 = arith.constant 1.000000e+00 : f32
    %4 = vector.broadcast %cst_5 : f32 to vector<2x8x1xf32>
    %5 = arith.addf %3, %4 : vector<2x8x1xf32>
    %6 = math.rsqrt %5 : vector<2x8x1xf32>
    %7 = vector.broadcast %6 : vector<2x8x1xf32> to vector<2x8x4xf32>
    %8 = arith.mulf %7, %0 : vector<2x8x4xf32>
    "tpu.trace_start"() <{level = 10 : i32, message = "bij,bjc->bic"}> : () -> ()
    %cst_6 = arith.constant dense<0.000000e+00> : vector<2x8x4xf32>
    %9 = tpu.matmul %1, %8, %cst_6 {dimension_numbers = #tpu.dot_dimension_numbers<[2], [1], [1], [2], [0, 0, 0, 1, 1, 2], [0], [0]>} : vector<2x8x8xf32>, vector<2x8x4xf32>, vector<2x8x4xf32> -> vector<2x8x4xf32>
    "tpu.trace_stop"() : () -> ()
    %10 = arith.addf %9, %8 : vector<2x8x4xf32>
    %11 = vector.broadcast %6 : vector<2x8x1xf32> to vector<2x8x4xf32>
    %12 = arith.mulf %11, %10 : vector<2x8x4xf32>
    %13 = vector.shape_cast %12 : vector<2x8x4xf32> to vector<16x4xf32>
    %c0_7 = arith.constant 0 : index
    %c0_8 = arith.constant 0 : index
    %14 = vector.load %arg3[%c0_7, %c0_8] : memref<4x32xf32, #tpu.memory_space<vmem>>, vector<4x32xf32>
    %cst_9 = arith.constant dense<0.000000e+00> : vector<16x32xf32>
    %15 = tpu.matmul %13, %14, %cst_9 {dimension_numbers = #tpu.dot_dimension_numbers<[1], [0], [0], [1], [0, 0, 1, 1], [], []>} : vector<16x4xf32>, vector<4x32xf32>, vector<16x32xf32> -> vector<16x32xf32>
    %cst_10 = arith.constant 0.000000e+00 : f32
    %16 = vector.broadcast %cst_10 : f32 to vector<16x32xf32>
    %17 = arith.maximumf %15, %16 : vector<16x32xf32>
    %c0_11 = arith.constant 0 : index
    %c0_12 = arith.constant 0 : index
    %18 = vector.load %arg4[%c0_11, %c0_12] : memref<32x16xf32, #tpu.memory_space<vmem>>, vector<32x16xf32>
    %cst_13 = arith.constant dense<0.000000e+00> : vector<16x16xf32>
    %19 = tpu.matmul %17, %18, %cst_13 {dimension_numbers = #tpu.dot_dimension_numbers<[1], [0], [0], [1], [0, 0, 1, 1], [], []>} : vector<16x32xf32>, vector<32x16xf32>, vector<16x16xf32> -> vector<16x16xf32>
    %20 = vector.shape_cast %19 : vector<16x16xf32> to vector<2x8x16xf32>
    %21 = vector.broadcast %6 : vector<2x8x1xf32> to vector<2x8x16xf32>
    %22 = arith.mulf %21, %20 : vector<2x8x16xf32>
    "tpu.trace_start"() <{level = 10 : i32, message = "bij,bjc->bic"}> : () -> ()
    %cst_14 = arith.constant dense<0.000000e+00> : vector<2x8x16xf32>
    %23 = tpu.matmul %1, %22, %cst_14 {dimension_numbers = #tpu.dot_dimension_numbers<[2], [1], [1], [2], [0, 0, 0, 1, 1, 2], [0], [0]>} : vector<2x8x8xf32>, vector<2x8x16xf32>, vector<2x8x16xf32> -> vector<2x8x16xf32>
    "tpu.trace_stop"() : () -> ()
    %24 = arith.addf %23, %22 : vector<2x8x16xf32>
    %25 = vector.broadcast %6 : vector<2x8x1xf32> to vector<2x8x16xf32>
    %26 = arith.mulf %25, %24 : vector<2x8x16xf32>
    %cst_15 = arith.constant 0.000000e+00 : f32
    %27 = vector.broadcast %cst_15 : f32 to vector<2x8x16xf32>
    %28 = arith.maximumf %26, %27 : vector<2x8x16xf32>
    %cst_16 = arith.constant dense<0.000000e+00> : vector<2x16xf32>
    %29 = vector.multi_reduction <add>, %28, %cst_16 [1] : vector<2x8x16xf32> to vector<2x16xf32>
    %cst_17 = arith.constant 8.000000e+00 : f32
    %30 = vector.broadcast %cst_17 : f32 to vector<2x16xf32>
    %31 = arith.divf %29, %30 : vector<2x16xf32>
    %c0_18 = arith.constant 0 : index
    %c0_19 = arith.constant 0 : index
    %c0_20 = arith.constant 0 : index
    %32 = vector.load %arg5[%c0_18, %c0_19, %c0_20] : memref<1x2x16xf32, #tpu.memory_space<vmem>>, vector<1x2x16xf32>
    %33 = vector.shape_cast %32 : vector<1x2x16xf32> to vector<2x16xf32>
    %34 = vector.shape_cast %31 : vector<2x16xf32> to vector<1x2x16xf32>
    tpu.vector_store %arg5[%c0_18, %c0_19, %c0_20], %34 {strides = array<i32>} : memref<1x2x16xf32, #tpu.memory_space<vmem>>, vector<1x2x16xf32>,
    return
  }
  func.func @transform_0(%arg0: i32) -> (i32, i32, i32) {
    %c0_i32 = arith.constant 0 : i32
    %c0_i32_0 = arith.constant 0 : i32
    %c0_i32_1 = arith.constant 0 : i32
    return %arg0, %c0_i32, %c0_i32_0 : i32, i32, i32
  }
  func.func @transform_1(%arg0: i32) -> (i32, i32, i32) {
    %c0_i32 = arith.constant 0 : i32
    %c0_i32_0 = arith.constant 0 : i32
    %c0_i32_1 = arith.constant 0 : i32
    return %arg0, %c0_i32, %c0_i32_0 : i32, i32, i32
  }
  func.func @transform_2(%arg0: i32) -> (i32, i32) {
    %c0_i32 = arith.constant 0 : i32
    %c0_i32_0 = arith.constant 0 : i32
    %c0_i32_1 = arith.constant 0 : i32
    return %c0_i32, %c0_i32_0 : i32, i32
  }
  func.func @transform_3(%arg0: i32) -> (i32, i32) {
    %c0_i32 = arith.constant 0 : i32
    %c0_i32_0 = arith.constant 0 : i32
    %c0_i32_1 = arith.constant 0 : i32
    return %c0_i32, %c0_i32_0 : i32, i32
  }
  func.func @transform_4(%arg0: i32) -> (i32, i32, i32) {
    %c0_i32 = arith.constant 0 : i32
    %c0_i32_0 = arith.constant 0 : i32
    %c0_i32_1 = arith.constant 0 : i32
    return %arg0, %c0_i32, %c0_i32_0 : i32, i32, i32
  }
}

</mosaic_0001>

<llo_original>
// kernel: tpu_custom_call.1
$region0: #{tpu_custom_call.1}
  #allocation0 [shape = 'u32[]', space=smem, size = 0x4, offset = 0x4, fixed_abs, tag = 'smem constant byte address 0x4 - core index']
  #allocation1 [shape = 'u32[144,128]{1,0:T(1,128)}', space=vmem, size = 0x12000, scoped, tag = 'internal scratch']
  %s0 = inlined_call_operand.vmem [shape: f32[4,8,4], index: 0, kind: input, shape index: {}]
  %s1 = inlined_call_operand.vmem [shape: f32[4,8,8], index: 1, kind: input, shape index: {}]
  %s2 = inlined_call_operand.vmem [shape: f32[4,32], index: 2, kind: input, shape index: {}]
  %s3 = inlined_call_operand.vmem [shape: f32[32,16], index: 3, kind: input, shape index: {}]
  %s4 = inlined_call_operand.hbm [shape: f32[2,2,16], index: 4, kind: output, shape index: {}]
  %s5 = sld [smem:[#allocation0]]
  $region49: #{tpu_custom_call.1} parent=0
    _
  %s7 = ssub.s32 1, %s5
  %s8 = scalar_select 0, %s7, %s5
  $region1: #{tpu_custom_call.1} parent=0
    #allocation2 [shape = 'u8[2048]{0}', space=vmem, size = 0x800, scoped, tag = 'output window, operand 0']
    #allocation3 [shape = 's32[2]{0}', space=sflag, size = 0x8, scoped, tag = 'scoped memory for tpu_custom_call.1']
    %9 = vsyncpa [#allocation3], 0
    %s10 = scalar_lea.sflag [#allocation3], 1
    %11 = vsyncpa %s10, 0
    loop: start=0, step=1, limit=4
    $region2: #{tpu_custom_call.1} parent=1 // loop_pre_header
      _
    $region3: #{tpu_custom_call.1} parent=1 // loop_header
      %s13 = sphi 0, %s17
      %p14 = scmp.ge.s32.totalorder %s13, 4
      %s23 = sphi 0, %s25
      %s26 = sphi 0, %s23
      %s27 = sphi 0, %s26
      %s43 = sphi 0, %s27
      %s49 = sphi 0, %s51
      %s52 = sphi 0, %s49
      %s53 = sphi 0, %s52
      %s69 = sphi 0, %s53
      %s73 = sphi 0, %s73
      %s75 = sphi 0, %s73
      %s76 = sphi 0, %s75
      %s90 = sphi 0, %s76
      %s94 = sphi 0, %s94
      %s96 = sphi 0, %s94
      %s97 = sphi 0, %s96
      %s111 = sphi 0, %s97
      %s117 = sphi 0, %s119
      %s120 = sphi 0, %s117
      %s121 = sphi 0, %s120
      %s137 = sphi 0, %s121
    $region4: #{tpu_custom_call.1} parent=1 // loop_header_branch
      %16 = sbr.rel (%p14) target = $region8
    $region5: #{tpu_custom_call.1} parent=1 // loop_body
      %s18 = ssub.s32 %s13, 1
      %s19 = ssub.s32 %s13, 2
      %s20 = sadd.s32 %s13, 1
      %s21 = ssub.s32 %s13, %s20
      %p22 = scmp.eq.s32.totalorder %s21, 0
      %s24 = sadd.s32 %s23, 1
      %s25 = scalar_select %p22, %s23, %s24
      %p28 = pneg %p22
      %p29 = scmp.eq.s32.totalorder %s13, 1
      %p30 = por %p28, %p29
      %p31 = scmp.ne.s32.totalorder %s23, %s26
      %p32 = scmp.eq.s32.totalorder %s13, 0
      %p33 = por %p31, %p32
      %p34 = scmp.ne.s32.totalorder %s23, %s26
      %p35 = scmp.eq.s32.totalorder %s18, 1
      %p36 = por %p34, %p35
      %p37 = scmp.ne.s32.totalorder %s26, %s27
      %p38 = scmp.eq.s32.totalorder %s18, 0
      %p39 = por %p37, %p38
      %p40 = scmp.ne.s32.totalorder %s26, %s27
      %p41 = scmp.eq.s32.totalorder %s19, 1
      %p42 = por %p40, %p41
      %p44 = scmp.ne.s32.totalorder %s27, %s43
      %p45 = scmp.eq.s32.totalorder %s19, 0
      %p46 = por %p44, %p45
      %s47 = ssub.s32 %s13, %s20
      %p48 = scmp.eq.s32.totalorder %s47, 0
      %s50 = sadd.s32 %s49, 1
      %s51 = scalar_select %p48, %s49, %s50
      %p54 = pneg %p48
      %p55 = scmp.eq.s32.totalorder %s13, 1
      %p56 = por %p54, %p55
      %p57 = scmp.ne.s32.totalorder %s49, %s52
      %p58 = scmp.eq.s32.totalorder %s13, 0
      %p59 = por %p57, %p58
      %p60 = scmp.ne.s32.totalorder %s49, %s52
      %p61 = scmp.eq.s32.totalorder %s18, 1
      %p62 = por %p60, %p61
      %p63 = scmp.ne.s32.totalorder %s52, %s53
      %p64 = scmp.eq.s32.totalorder %s18, 0
      %p65 = por %p63, %p64
      %p66 = scmp.ne.s32.totalorder %s52, %s53
      %p67 = scmp.eq.s32.totalorder %s19, 1
      %p68 = por %p66, %p67
      %p70 = scmp.ne.s32.totalorder %s53, %s69
      %p71 = scmp.eq.s32.totalorder %s19, 0
      %p72 = por %p70, %p71
      %s74 = sadd.s32 %s73, 1
      %p77 = scmp.eq.s32.totalorder %s13, 1
      %p78 = scmp.ne.s32.totalorder %s73, %s75
      %p79 = scmp.eq.s32.totalorder %s13, 0
      %p80 = por %p78, %p79
      %p81 = scmp.ne.s32.totalorder %s73, %s75
      %p82 = scmp.eq.s32.totalorder %s18, 1
      %p83 = por %p81, %p82
      %p84 = scmp.ne.s32.totalorder %s75, %s76
      %p85 = scmp.eq.s32.totalorder %s18, 0
      %p86 = por %p84, %p85
      %p87 = scmp.ne.s32.totalorder %s75, %s76
      %p88 = scmp.eq.s32.totalorder %s19, 1
      %p89 = por %p87, %p88
      %p91 = scmp.ne.s32.totalorder %s76, %s90
      %p92 = scmp.eq.s32.totalorder %s19, 0
      %p93 = por %p91, %p92
      %s95 = sadd.s32 %s94, 1
      %p98 = scmp.eq.s32.totalorder %s13, 1
      %p99 = scmp.ne.s32.totalorder %s94, %s96
      %p100 = scmp.eq.s32.totalorder %s13, 0
      %p101 = por %p99, %p100
      %p102 = scmp.ne.s32.totalorder %s94, %s96
      %p103 = scmp.eq.s32.totalorder %s18, 1
      %p104 = por %p102, %p103
      %p105 = scmp.ne.s32.totalorder %s96, %s97
      %p106 = scmp.eq.s32.totalorder %s18, 0
      %p107 = por %p105, %p106
      %p108 = scmp.ne.s32.totalorder %s96, %s97
      %p109 = scmp.eq.s32.totalorder %s19, 1
      %p110 = por %p108, %p109
      %p112 = scmp.ne.s32.totalorder %s97, %s111
      %p113 = scmp.eq.s32.totalorder %s19, 0
      %p114 = por %p112, %p113
      %s115 = ssub.s32 %s13, %s20
      %p116 = scmp.eq.s32.totalorder %s115, 0
      %s118 = sadd.s32 %s117, 1
      %s119 = scalar_select %p116, %s117, %s118
      %p122 = pneg %p116
      %p123 = scmp.eq.s32.totalorder %s13, 1
      %p124 = por %p122, %p123
      %p125 = scmp.ne.s32.totalorder %s117, %s120
      %p126 = scmp.eq.s32.totalorder %s13, 0
      %p127 = por %p125, %p126
      %p128 = scmp.ne.s32.totalorder %s117, %s120
      %p129 = scmp.eq.s32.totalorder %s18, 1
      %p130 = por %p128, %p129
      %p131 = scmp.ne.s32.totalorder %s120, %s121
      %p132 = scmp.eq.s32.totalorder %s18, 0
      %p133 = por %p131, %p132
      %p134 = scmp.ne.s32.totalorder %s120, %s121
      %p135 = scmp.eq.s32.totalorder %s19, 1
      %p136 = por %p134, %p135
      %p138 = scmp.ne.s32.totalorder %s121, %s137
      %p139 = scmp.eq.s32.totalorder %s19, 0
      %p140 = por %p138, %p139
      %p141 = scmp.le.s32.totalorder 1, %s13
      %p142 = scmp.lt.s32.totalorder %s13, 3
      %p143 = pnand %p141, %p142
      %p144 = pneg %p143
      // Predicated region
      $region9: #{tpu_custom_call.1} parent=5 // pred_check
        _
      $region10: #{tpu_custom_call.1} parent=5 // pred_check_branch
        %146 = sbr.rel (%p143) target = $region12
      $region11: #{tpu_custom_call.1} parent=5 // pred_region
        %s147 = ssub.s32 %s13, 1
        // Predicated region
        $region13: #{tpu_custom_call.1} parent=11 // pred_check
          %p148 = pneg %p86
        $region14: #{tpu_custom_call.1} parent=11 // pred_check_branch
          %150 = sbr.rel (%p148) target = $region16
        $region15: #{tpu_custom_call.1} parent=11 // pred_region
          _
        $region16: #{tpu_custom_call.1} parent=11 // pred_fallthru
          _
        // Predicated region
        $region17: #{tpu_custom_call.1} parent=11 // pred_check
          %p151 = pneg %p107
        $region18: #{tpu_custom_call.1} parent=11 // pred_check_branch
          %153 = sbr.rel (%p151) target = $region20
        $region19: #{tpu_custom_call.1} parent=11 // pred_region
          _
        $region20: #{tpu_custom_call.1} parent=11 // pred_fallthru
          _
      $region12: #{tpu_custom_call.1} parent=5 // pred_fallthru
        _
      %p154 = scmp.lt.s32.totalorder %s13, 2
      // Predicated region
      $region21: #{tpu_custom_call.1} parent=5 // pred_check
        %p155 = pneg %p154
      $region22: #{tpu_custom_call.1} parent=5 // pred_check_branch
        %157 = sbr.rel (%p155) target = $region24
      $region23: #{tpu_custom_call.1} parent=5 // pred_region
        // Predicated region
        $region25: #{tpu_custom_call.1} parent=23 // pred_check
          %p158 = pneg %p33
        $region26: #{tpu_custom_call.1} parent=23 // pred_check_branch
          %160 = sbr.rel (%p158) target = $region28
        $region27: #{tpu_custom_call.1} parent=23 // pred_region
          %s161 = smul.u32 2, %s13
          %p162 = scmp.lt.s32.totalorder %s161, 3
          %s163 = scalar_select %p162, %s161, 3
          %s164 = smul.addr %s163, 8
          %s165 = scalar_lea.vmem %s0, %s164
          %s166 = smul.u32 2, %s13
        $region28: #{tpu_custom_call.1} parent=23 // pred_fallthru
          _
        // Predicated region
        $region29: #{tpu_custom_call.1} parent=23 // pred_check
          %p167 = pneg %p59
        $region30: #{tpu_custom_call.1} parent=23 // pred_check_branch
          %169 = sbr.rel (%p167) target = $region32
        $region31: #{tpu_custom_call.1} parent=23 // pred_region
          %s170 = smul.u32 2, %s13
          %p171 = scmp.lt.s32.totalorder %s170, 3
          %s172 = scalar_select %p171, %s170, 3
          %s173 = smul.addr %s172, 8
          %s174 = scalar_lea.vmem %s1, %s173
          %s175 = smul.u32 2, %s13
        $region32: #{tpu_custom_call.1} parent=23 // pred_fallthru
          _
      $region24: #{tpu_custom_call.1} parent=5 // pred_fallthru
        _
      %p176 = scmp.le.s32.totalorder 1, %s13
      %p177 = scmp.lt.s32.totalorder %s13, 3
      %p178 = pnand %p176, %p177
      %p179 = pneg %p178
      // Predicated region
      $region33: #{tpu_custom_call.1} parent=5 // pred_check
        _
      $region34: #{tpu_custom_call.1} parent=5 // pred_check_branch
        %181 = sbr.rel (%p178) target = $region36
      $region35: #{tpu_custom_call.1} parent=5 // pred_region
        %s182 = ssub.s32 %s13, 1
        %s183 = smul.u32 2, %s18
        %p184 = scmp.lt.s32.totalorder %s183, 3
        %s185 = scalar_select %p184, %s183, 3
        %s186 = smul.addr %s185, 8
        %s187 = scalar_lea.vmem %s0, %s186
        %p188 = pneg %p39
        %p189 = pneg %p36
        %s190 = smul.u32 2, %s18
        %p191 = scmp.lt.s32.totalorder %s190, 3
        %s192 = scalar_select %p191, %s190, 3
        %s193 = smul.addr %s192, 8
        %s194 = scalar_lea.vmem %s1, %s193
        %p195 = pneg %p65
        %p196 = pneg %p62
        %p197 = pneg %p86
        %p198 = pneg %p83
        %p199 = pneg %p107
        %p200 = pneg %p104
        %p201 = pneg %p133
        %p202 = pneg %p130
        %s203 = sand.u32 %s120, 1
        %s204 = scalar_lea.sflag [#allocation3], %s203
        %s205 = sand.u32 %s120, 1
        %s206 = smul.addr %s205, 2
        %s207 = scalar_lea.vmem [#allocation2], %s206
        %s208 = smul.u32 2, %s18
        %p209 = scmp.lt.s32.totalorder %s208, 3
        %s210 = scalar_select %p209, %s208, 3
        %s211 = smul.addr %s210, 8
        %s212 = scalar_lea.vmem %s0, %s211
        %s213 = smul.u32 2, %s18
        %s214 = smul.u32 2, %s18
        %p215 = scmp.lt.s32.totalorder %s214, 3
        %s216 = scalar_select %p215, %s214, 3
        %s217 = smul.addr %s216, 8
        %s218 = scalar_lea.vmem %s1, %s217
        %s219 = smul.u32 2, %s18
        %v220 = vld [vmem:[%s212] sm:$0xff]
        %v221 = vld [vmem:[%s212 + $0x8] sm:$0xff]
        %v222 = vld [vmem:[%s218] sm:$0xff]
        %v223 = vld [vmem:[%s218 + $0x8] sm:$0xff]
        %vm224 = vcmask 64512
        %v225 = vsel %vm224, %v222, 0.0
        %226 = vadd.xlane.f32.xlu0 %v225
        %v227 = vpop.xlane.xlu0 %226
        %v228 = vsel %vm224, %v223, 0.0
        %229 = vadd.xlane.f32.xlu0 %v228
        %v230 = vpop.xlane.xlu0 %229
        %v231 = vadd.f32 %v227, 1.0
        %v232 = vadd.f32 %v230, 1.0
        %v233 = vrsqrt.pop %v231
        %v234 = vrsqrt.pop %v232
        %v235 = vmul.f32 %v233, %v220
        %v236 = vmul.f32 %v234, %v221
        %v238 = vsel %vm224, %v222, 0
        %240 = vmatprep.subr.mxu0 0.0
        %241 = vmatpush1.msra.mxu0 %v235
        %242 = vmatprep.subr.mxu0 0.0
        %243 = vmatpush1.msra.mxu0 0.0
        %244 = vmatprep.subr.mxu0 0.0
        %245 = vmatpush1.msra.mxu0 0.0
        %246 = vmatprep.subr.mxu0 0.0
        %247 = vmatpush1.msra.mxu0 0.0
        %248 = vmatprep.subr.mxu0 0.0
        %249 = vmatpush1.msra.mxu0 0.0
        %250 = vmatprep.subr.mxu0 0.0
        %251 = vmatpush1.msra.mxu0 0.0
        %252 = vmatprep.subr.mxu0 0.0
        %253 = vmatpush1.msra.mxu0 0.0
        %254 = vmatprep.subr.mxu0 0.0
        %255 = vmatpush1.msra.mxu0 0.0
        %256 = vmatprep.subr.mxu0 0.0
        %257 = vmatpush1.msra.mxu0 0.0
        %258 = vmatprep.subr.mxu0 0.0
        %259 = vmatpush1.msra.mxu0 0.0
        %260 = vmatprep.subr.mxu0 0.0
        %261 = vmatpush1.msra.mxu0 0.0
        %262 = vmatprep.subr.mxu0 0.0
        %263 = vmatpush1.msra.mxu0 0.0
        %264 = vmatprep.subr.mxu0 0.0
        %265 = vmatpush1.msra.mxu0 0.0
        %266 = vmatprep.subr.mxu0 0.0
        %267 = vmatpush1.msra.mxu0 0.0
        %268 = vmatprep.subr.mxu0 0.0
        %269 = vmatpush1.msra.mxu0 0.0
        %270 = vmatprep.subr.mxu0 0.0
        %271 = vmatpush1.msra.mxu0 0.0
        %272 = vmatprep.subr.mxu0 0.0
        %273 = vmatpush1.msra.mxu0 0.0
        %274 = vmatprep.subr.mxu0 0.0
        %275 = vmatpush1.msra.mxu0 0.0
        %276 = vmatprep.subr.mxu0 0.0
        %277 = vmatpush1.msra.mxu0 0.0
        %278 = vmatprep.subr.mxu0 0.0
        %279 = vmatpush1.msra.mxu0 0.0
        %280 = vmatprep.subr.mxu0 0.0
        %281 = vmatpush1.msra.mxu0 0.0
        %282 = vmatprep.subr.mxu0 0.0
        %283 = vmatpush1.msra.mxu0 0.0
        %284 = vmatprep.subr.mxu0 0.0
        %285 = vmatpush1.msra.mxu0 0.0
        %286 = vmatprep.subr.mxu0 0.0
        %287 = vmatpush1.msra.mxu0 0.0
        %288 = vmatprep.subr.mxu0 0.0
        %289 = vmatpush1.msra.mxu0 0.0
        %290 = vmatprep.subr.mxu0 0.0
        %291 = vmatpush1.msra.mxu0 0.0
        %292 = vmatprep.subr.mxu0 0.0
        %293 = vmatpush1.msra.mxu0 0.0
        %294 = vmatprep.subr.mxu0 0.0
        %295 = vmatpush1.msra.mxu0 0.0
        %296 = vmatprep.subr.mxu0 0.0
        %297 = vmatpush1.msra.mxu0 0.0
        %298 = vmatprep.subr.mxu0 0.0
        %299 = vmatpush1.msra.mxu0 0.0
        %300 = vmatprep.subr.mxu0 0.0
        %301 = vmatpush1.msra.mxu0 0.0
        %302 = vmatprep.subr.mxu0 0.0
        %303 = vmatpush1.msra.mxu0 0.0
        %304 = vmatprep.mubr.f32.mxu0 0.0
        %305 = vmatmul.mubr.f32.gmra.mrb[0].mxu0 %v238
        %v306 = vpop.f32.mrb[0].mxu0
        %v307 = vadd.f32 %v235, %v306
        %v308 = vpop.f32.mrb[0].mxu0
        %309 = vdwg.mxu0
        %v311 = vsel %vm224, %v223, 0
        %313 = vmatprep.subr.mxu0 0.0
        %314 = vmatpush1.msra.mxu0 %v236
        %315 = vmatprep.subr.mxu0 0.0
        %316 = vmatpush1.msra.mxu0 0.0
        %317 = vmatprep.subr.mxu0 0.0
        %318 = vmatpush1.msra.mxu0 0.0
        %319 = vmatprep.subr.mxu0 0.0
        %320 = vmatpush1.msra.mxu0 0.0
        %321 = vmatprep.subr.mxu0 0.0
        %322 = vmatpush1.msra.mxu0 0.0
        %323 = vmatprep.subr.mxu0 0.0
        %324 = vmatpush1.msra.mxu0 0.0
        %325 = vmatprep.subr.mxu0 0.0
        %326 = vmatpush1.msra.mxu0 0.0
        %327 = vmatprep.subr.mxu0 0.0
        %328 = vmatpush1.msra.mxu0 0.0
        %329 = vmatprep.subr.mxu0 0.0
        %330 = vmatpush1.msra.mxu0 0.0
        %331 = vmatprep.subr.mxu0 0.0
        %332 = vmatpush1.msra.mxu0 0.0
        %333 = vmatprep.subr.mxu0 0.0
        %334 = vmatpush1.msra.mxu0 0.0
        %335 = vmatprep.subr.mxu0 0.0
        %336 = vmatpush1.msra.mxu0 0.0
        %337 = vmatprep.subr.mxu0 0.0
        %338 = vmatpush1.msra.mxu0 0.0
        %339 = vmatprep.subr.mxu0 0.0
        %340 = vmatpush1.msra.mxu0 0.0
        %341 = vmatprep.subr.mxu0 0.0
        %342 = vmatpush1.msra.mxu0 0.0
        %343 = vmatprep.subr.mxu0 0.0
        %344 = vmatpush1.msra.mxu0 0.0
        %345 = vmatprep.subr.mxu0 0.0
        %346 = vmatpush1.msra.mxu0 0.0
        %347 = vmatprep.subr.mxu0 0.0
        %348 = vmatpush1.msra.mxu0 0.0
        %349 = vmatprep.subr.mxu0 0.0
        %350 = vmatpush1.msra.mxu0 0.0
        %351 = vmatprep.subr.mxu0 0.0
        %352 = vmatpush1.msra.mxu0 0.0
        %353 = vmatprep.subr.mxu0 0.0
        %354 = vmatpush1.msra.mxu0 0.0
        %355 = vmatprep.subr.mxu0 0.0
        %356 = vmatpush1.msra.mxu0 0.0
        %357 = vmatprep.subr.mxu0 0.0
        %358 = vmatpush1.msra.mxu0 0.0
        %359 = vmatprep.subr.mxu0 0.0
        %360 = vmatpush1.msra.mxu0 0.0
        %361 = vmatprep.subr.mxu0 0.0
        %362 = vmatpush1.msra.mxu0 0.0
        %363 = vmatprep.subr.mxu0 0.0
        %364 = vmatpush1.msra.mxu0 0.0
        %365 = vmatprep.subr.mxu0 0.0
        %366 = vmatpush1.msra.mxu0 0.0
        %367 = vmatprep.subr.mxu0 0.0
        %368 = vmatpush1.msra.mxu0 0.0
        %369 = vmatprep.subr.mxu0 0.0
        %370 = vmatpush1.msra.mxu0 0.0
        %371 = vmatprep.subr.mxu0 0.0
        %372 = vmatpush1.msra.mxu0 0.0
        %373 = vmatprep.subr.mxu0 0.0
        %374 = vmatpush1.msra.mxu0 0.0
        %375 = vmatprep.subr.mxu0 0.0
        %376 = vmatpush1.msra.mxu0 0.0
        %377 = vmatprep.mubr.f32.mxu0 0.0
        %378 = vmatmul.mubr.f32.gmra.mrb[0].mxu0 %v311
        %v379 = vpop.f32.mrb[0].mxu0
        %v380 = vadd.f32 %v236, %v379
        %v381 = vpop.f32.mrb[0].mxu0
        %382 = vdwg.mxu0
        %v383 = vmul.f32 %v233, %v307
        %v384 = vmul.f32 %v234, %v380
        %v385 = vld [vmem:[%s2] sm:$0xf]
        %vm386 = vcmask 31744
        %v388 = vsel %vm386, %v383, 0
        %v391 = vsel %vm386, %v384, 0
        %vm393 = vcmask 1043456
        %v395 = vsel %vm393, %v385, 0
        %397 = vmatprep.subr.mxu0 0.0
        %398 = vmatpush1.msra.mxu0 %v395
        %399 = vmatprep.subr.mxu0 0.0
        %400 = vmatpush1.msra.mxu0 0.0
        %401 = vmatprep.subr.mxu0 0.0
        %402 = vmatpush1.msra.mxu0 0.0
        %403 = vmatprep.subr.mxu0 0.0
        %404 = vmatpush1.msra.mxu0 0.0
        %405 = vmatprep.subr.mxu0 0.0
        %406 = vmatpush1.msra.mxu0 0.0
        %407 = vmatprep.subr.mxu0 0.0
        %408 = vmatpush1.msra.mxu0 0.0
        %409 = vmatprep.subr.mxu0 0.0
        %410 = vmatpush1.msra.mxu0 0.0
        %411 = vmatprep.subr.mxu0 0.0
        %412 = vmatpush1.msra.mxu0 0.0
        %413 = vmatprep.subr.mxu0 0.0
        %414 = vmatpush1.msra.mxu0 0.0
        %415 = vmatprep.subr.mxu0 0.0
        %416 = vmatpush1.msra.mxu0 0.0
        %417 = vmatprep.subr.mxu0 0.0
        %418 = vmatpush1.msra.mxu0 0.0
        %419 = vmatprep.subr.mxu0 0.0
        %420 = vmatpush1.msra.mxu0 0.0
        %421 = vmatprep.subr.mxu0 0.0
        %422 = vmatpush1.msra.mxu0 0.0
        %423 = vmatprep.subr.mxu0 0.0
        %424 = vmatpush1.msra.mxu0 0.0
        %425 = vmatprep.subr.mxu0 0.0
        %426 = vmatpush1.msra.mxu0 0.0
        %427 = vmatprep.subr.mxu0 0.0
        %428 = vmatpush1.msra.mxu0 0.0
        %429 = vmatprep.subr.mxu0 0.0
        %430 = vmatpush1.msra.mxu0 0.0
        %431 = vmatprep.subr.mxu0 0.0
        %432 = vmatpush1.msra.mxu0 0.0
        %433 = vmatprep.subr.mxu0 0.0
        %434 = vmatpush1.msra.mxu0 0.0
        %435 = vmatprep.subr.mxu0 0.0
        %436 = vmatpush1.msra.mxu0 0.0
        %437 = vmatprep.subr.mxu0 0.0
        %438 = vmatpush1.msra.mxu0 0.0
        %439 = vmatprep.subr.mxu0 0.0
        %440 = vmatpush1.msra.mxu0 0.0
        %441 = vmatprep.subr.mxu0 0.0
        %442 = vmatpush1.msra.mxu0 0.0
        %443 = vmatprep.subr.mxu0 0.0
        %444 = vmatpush1.msra.mxu0 0.0
        %445 = vmatprep.subr.mxu0 0.0
        %446 = vmatpush1.msra.mxu0 0.0
        %447 = vmatprep.subr.mxu0 0.0
        %448 = vmatpush1.msra.mxu0 0.0
        %449 = vmatprep.subr.mxu0 0.0
        %450 = vmatpush1.msra.mxu0 0.0
        %451 = vmatprep.subr.mxu0 0.0
        %452 = vmatpush1.msra.mxu0 0.0
        %453 = vmatprep.subr.mxu0 0.0
        %454 = vmatpush1.msra.mxu0 0.0
        %455 = vmatprep.subr.mxu0 0.0
        %456 = vmatpush1.msra.mxu0 0.0
        %457 = vmatprep.subr.mxu0 0.0
        %458 = vmatpush1.msra.mxu0 0.0
        %459 = vmatprep.subr.mxu0 0.0
        %460 = vmatpush1.msra.mxu0 0.0
        %461 = vmatprep.mubr.f32.mxu0 0.0
        %462 = vmatmul.mubr.f32.gmra.mrb[0].mxu0 %v388
        %v463 = vpop.f32.mrb[0].mxu0
        %v464 = vadd.f32 0.0, %v463
        %v465 = vpop.f32.mrb[0].mxu0
        %466 = vmatprep.mubr.f32.mxu0 0.0
        %467 = vmatmul.mubr.f32.gmra.mrb[0].mxu0 %v391
        %v468 = vpop.f32.mrb[0].mxu0
        %v469 = vadd.f32 0.0, %v468
        %v470 = vpop.f32.mrb[0].mxu0
        %471 = vdwg.mxu0
        %v472 = vmax.f32 %v464, 0.0
        %v473 = vmax.f32 %v469, 0.0
        %v474 = vld [vmem:[%s3] sm:$0xff]
        %v475 = vld [vmem:[%s3 + $0x8] sm:$0xff]
        %v476 = vld [vmem:[%s3 + $0x10] sm:$0xff]
        %v477 = vld [vmem:[%s3 + $0x18] sm:$0xff]
        %vm478 = vcmask 261120
        %v480 = vsel %vm478, %v472, 0
        %v483 = vsel %vm478, %v473, 0
        %485 = vmatprep.subr.mxu0 0.0
        %486 = vmatpush1.msra.mxu0 %v474
        %487 = vmatprep.subr.mxu0 0.0
        %488 = vmatpush1.msra.mxu0 %v475
        %489 = vmatprep.subr.mxu0 0.0
        %490 = vmatpush1.msra.mxu0 %v476
        %491 = vmatprep.subr.mxu0 0.0
        %492 = vmatpush1.msra.mxu0 %v477
        %493 = vmatprep.subr.mxu0 0.0
        %494 = vmatpush1.msra.mxu0 0.0
        %495 = vmatprep.subr.mxu0 0.0
        %496 = vmatpush1.msra.mxu0 0.0
        %497 = vmatprep.subr.mxu0 0.0
        %498 = vmatpush1.msra.mxu0 0.0
        %499 = vmatprep.subr.mxu0 0.0
        %500 = vmatpush1.msra.mxu0 0.0
        %501 = vmatprep.subr.mxu0 0.0
        %502 = vmatpush1.msra.mxu0 0.0
        %503 = vmatprep.subr.mxu0 0.0
        %504 = vmatpush1.msra.mxu0 0.0
        %505 = vmatprep.subr.mxu0 0.0
        %506 = vmatpush1.msra.mxu0 0.0
        %507 = vmatprep.subr.mxu0 0.0
        %508 = vmatpush1.msra.mxu0 0.0
        %509 = vmatprep.subr.mxu0 0.0
        %510 = vmatpush1.msra.mxu0 0.0
        %511 = vmatprep.subr.mxu0 0.0
        %512 = vmatpush1.msra.mxu0 0.0
        %513 = vmatprep.subr.mxu0 0.0
        %514 = vmatpush1.msra.mxu0 0.0
        %515 = vmatprep.subr.mxu0 0.0
        %516 = vmatpush1.msra.mxu0 0.0
        %517 = vmatprep.subr.mxu0 0.0
        %518 = vmatpush1.msra.mxu0 0.0
        %519 = vmatprep.subr.mxu0 0.0
        %520 = vmatpush1.msra.mxu0 0.0
        %521 = vmatprep.subr.mxu0 0.0
        %522 = vmatpush1.msra.mxu0 0.0
        %523 = vmatprep.subr.mxu0 0.0
        %524 = vmatpush1.msra.mxu0 0.0
        %525 = vmatprep.subr.mxu0 0.0
        %526 = vmatpush1.msra.mxu0 0.0
        %527 = vmatprep.subr.mxu0 0.0
        %528 = vmatpush1.msra.mxu0 0.0
        %529 = vmatprep.subr.mxu0 0.0
        %530 = vmatpush1.msra.mxu0 0.0
        %531 = vmatprep.subr.mxu0 0.0
        %532 = vmatpush1.msra.mxu0 0.0
        %533 = vmatprep.subr.mxu0 0.0
        %534 = vmatpush1.msra.mxu0 0.0
        %535 = vmatprep.subr.mxu0 0.0
        %536 = vmatpush1.msra.mxu0 0.0
        %537 = vmatprep.subr.mxu0 0.0
        %538 = vmatpush1.msra.mxu0 0.0
        %539 = vmatprep.subr.mxu0 0.0
        %540 = vmatpush1.msra.mxu0 0.0
        %541 = vmatprep.subr.mxu0 0.0
        %542 = vmatpush1.msra.mxu0 0.0
        %543 = vmatprep.subr.mxu0 0.0
        %544 = vmatpush1.msra.mxu0 0.0
        %545 = vmatprep.subr.mxu0 0.0
        %546 = vmatpush1.msra.mxu0 0.0
        %547 = vmatprep.subr.mxu0 0.0
        %548 = vmatpush1.msra.mxu0 0.0
        %549 = vmatprep.mubr.f32.mxu0 0.0
        %550 = vmatmul.mubr.f32.gmra.mrb[0].mxu0 %v480
        %v551 = vpop.f32.mrb[0].mxu0
        %v552 = vadd.f32 0.0, %v551
        %v553 = vpop.f32.mrb[0].mxu0
        %554 = vmatprep.mubr.f32.mxu0 0.0
        %555 = vmatmul.mubr.f32.gmra.mrb[0].mxu0 %v483
        %v556 = vpop.f32.mrb[0].mxu0
        %v557 = vadd.f32 0.0, %v556
        %v558 = vpop.f32.mrb[0].mxu0
        %559 = vdwg.mxu0
        %v560 = vmul.f32 %v233, %v552
        %v561 = vmul.f32 %v234, %v557
        %562 = vmatprep.subr.mxu0 0.0
        %563 = vmatpush1.msra.mxu0 %v560
        %564 = vmatprep.subr.mxu0 0.0
        %565 = vmatpush1.msra.mxu0 0.0
        %566 = vmatprep.subr.mxu0 0.0
        %567 = vmatpush1.msra.mxu0 0.0
        %568 = vmatprep.subr.mxu0 0.0
        %569 = vmatpush1.msra.mxu0 0.0
        %570 = vmatprep.subr.mxu0 0.0
        %571 = vmatpush1.msra.mxu0 0.0
        %572 = vmatprep.subr.mxu0 0.0
        %573 = vmatpush1.msra.mxu0 0.0
        %574 = vmatprep.subr.mxu0 0.0
        %575 = vmatpush1.msra.mxu0 0.0
        %576 = vmatprep.subr.mxu0 0.0
        %577 = vmatpush1.msra.mxu0 0.0
        %578 = vmatprep.subr.mxu0 0.0
        %579 = vmatpush1.msra.mxu0 0.0
        %580 = vmatprep.subr.mxu0 0.0
        %581 = vmatpush1.msra.mxu0 0.0
        %582 = vmatprep.subr.mxu0 0.0
        %583 = vmatpush1.msra.mxu0 0.0
        %584 = vmatprep.subr.mxu0 0.0
        %585 = vmatpush1.msra.mxu0 0.0
        %586 = vmatprep.subr.mxu0 0.0
        %587 = vmatpush1.msra.mxu0 0.0
        %588 = vmatprep.subr.mxu0 0.0
        %589 = vmatpush1.msra.mxu0 0.0
        %590 = vmatprep.subr.mxu0 0.0
        %591 = vmatpush1.msra.mxu0 0.0
        %592 = vmatprep.subr.mxu0 0.0
        %593 = vmatpush1.msra.mxu0 0.0
        %594 = vmatprep.subr.mxu0 0.0
        %595 = vmatpush1.msra.mxu0 0.0
        %596 = vmatprep.subr.mxu0 0.0
        %597 = vmatpush1.msra.mxu0 0.0
        %598 = vmatprep.subr.mxu0 0.0
        %599 = vmatpush1.msra.mxu0 0.0
        %600 = vmatprep.subr.mxu0 0.0
        %601 = vmatpush1.msra.mxu0 0.0
        %602 = vmatprep.subr.mxu0 0.0
        %603 = vmatpush1.msra.mxu0 0.0
        %604 = vmatprep.subr.mxu0 0.0
        %605 = vmatpush1.msra.mxu0 0.0
        %606 = vmatprep.subr.mxu0 0.0
        %607 = vmatpush1.msra.mxu0 0.0
        %608 = vmatprep.subr.mxu0 0.0
        %609 = vmatpush1.msra.mxu0 0.0
        %610 = vmatprep.subr.mxu0 0.0
        %611 = vmatpush1.msra.mxu0 0.0
        %612 = vmatprep.subr.mxu0 0.0
        %613 = vmatpush1.msra.mxu0 0.0
        %614 = vmatprep.subr.mxu0 0.0
        %615 = vmatpush1.msra.mxu0 0.0
        %616 = vmatprep.subr.mxu0 0.0
        %617 = vmatpush1.msra.mxu0 0.0
        %618 = vmatprep.subr.mxu0 0.0
        %619 = vmatpush1.msra.mxu0 0.0
        %620 = vmatprep.subr.mxu0 0.0
        %621 = vmatpush1.msra.mxu0 0.0
        %622 = vmatprep.subr.mxu0 0.0
        %623 = vmatpush1.msra.mxu0 0.0
        %624 = vmatprep.subr.mxu0 0.0
        %625 = vmatpush1.msra.mxu0 0.0
        %626 = vmatprep.mubr.f32.mxu0 0.0
        %627 = vmatmul.mubr.f32.gmra.mrb[0].mxu0 %v238
        %v628 = vpop.f32.mrb[0].mxu0
        %v629 = vadd.f32 %v560, %v628
        %v630 = vpop.f32.mrb[0].mxu0
        %631 = vdwg.mxu0
        %632 = vmatprep.subr.mxu0 0.0
        %633 = vmatpush1.msra.mxu0 %v561
        %634 = vmatprep.subr.mxu0 0.0
        %635 = vmatpush1.msra.mxu0 0.0
        %636 = vmatprep.subr.mxu0 0.0
        %637 = vmatpush1.msra.mxu0 0.0
        %638 = vmatprep.subr.mxu0 0.0
        %639 = vmatpush1.msra.mxu0 0.0
        %640 = vmatprep.subr.mxu0 0.0
        %641 = vmatpush1.msra.mxu0 0.0
        %642 = vmatprep.subr.mxu0 0.0
        %643 = vmatpush1.msra.mxu0 0.0
        %644 = vmatprep.subr.mxu0 0.0
        %645 = vmatpush1.msra.mxu0 0.0
        %646 = vmatprep.subr.mxu0 0.0
        %647 = vmatpush1.msra.mxu0 0.0
        %648 = vmatprep.subr.mxu0 0.0
        %649 = vmatpush1.msra.mxu0 0.0
        %650 = vmatprep.subr.mxu0 0.0
        %651 = vmatpush1.msra.mxu0 0.0
        %652 = vmatprep.subr.mxu0 0.0
        %653 = vmatpush1.msra.mxu0 0.0
        %654 = vmatprep.subr.mxu0 0.0
        %655 = vmatpush1.msra.mxu0 0.0
        %656 = vmatprep.subr.mxu0 0.0
        %657 = vmatpush1.msra.mxu0 0.0
        %658 = vmatprep.subr.mxu0 0.0
        %659 = vmatpush1.msra.mxu0 0.0
        %660 = vmatprep.subr.mxu0 0.0
        %661 = vmatpush1.msra.mxu0 0.0
        %662 = vmatprep.subr.mxu0 0.0
        %663 = vmatpush1.msra.mxu0 0.0
        %664 = vmatprep.subr.mxu0 0.0
        %665 = vmatpush1.msra.mxu0 0.0
        %666 = vmatprep.subr.mxu0 0.0
        %667 = vmatpush1.msra.mxu0 0.0
        %668 = vmatprep.subr.mxu0 0.0
        %669 = vmatpush1.msra.mxu0 0.0
        %670 = vmatprep.subr.mxu0 0.0
        %671 = vmatpush1.msra.mxu0 0.0
        %672 = vmatprep.subr.mxu0 0.0
        %673 = vmatpush1.msra.mxu0 0.0
        %674 = vmatprep.subr.mxu0 0.0
        %675 = vmatpush1.msra.mxu0 0.0
        %676 = vmatprep.subr.mxu0 0.0
        %677 = vmatpush1.msra.mxu0 0.0
        %678 = vmatprep.subr.mxu0 0.0
        %679 = vmatpush1.msra.mxu0 0.0
        %680 = vmatprep.subr.mxu0 0.0
        %681 = vmatpush1.msra.mxu0 0.0
        %682 = vmatprep.subr.mxu0 0.0
        %683 = vmatpush1.msra.mxu0 0.0
        %684 = vmatprep.subr.mxu0 0.0
        %685 = vmatpush1.msra.mxu0 0.0
        %686 = vmatprep.subr.mxu0 0.0
        %687 = vmatpush1.msra.mxu0 0.0
        %688 = vmatprep.subr.mxu0 0.0
        %689 = vmatpush1.msra.mxu0 0.0
        %690 = vmatprep.subr.mxu0 0.0
        %691 = vmatpush1.msra.mxu0 0.0
        %692 = vmatprep.subr.mxu0 0.0
        %693 = vmatpush1.msra.mxu0 0.0
        %694 = vmatprep.subr.mxu0 0.0
        %695 = vmatpush1.msra.mxu0 0.0
        %696 = vmatprep.mubr.f32.mxu0 0.0
        %697 = vmatmul.mubr.f32.gmra.mrb[0].mxu0 %v311
        %v698 = vpop.f32.mrb[0].mxu0
        %v699 = vadd.f32 %v561, %v698
        %v700 = vpop.f32.mrb[0].mxu0
        %701 = vdwg.mxu0
        %v702 = vmul.f32 %v233, %v629
        %v703 = vmul.f32 %v234, %v699
        %v704 = vmax.f32 %v702, 0.0
        %v705 = vmax.f32 %v703, 0.0
        %vm706 = vcmask 130048
        %v707 = vsel %vm706, %v704, 0.0
        %v708 = vrot.slane %v707, 4
        %v709 = vadd.f32 %v707, %v708
        %v710 = vrot.slane %v709, 2
        %v711 = vadd.f32 %v709, %v710
        %v712 = vrot.slane %v711, 1
        %v713 = vadd.f32 %v711, %v712
        %v714 = vsel %vm706, %v705, 0.0
        %v715 = vrot.slane %v714, 4
        %v716 = vadd.f32 %v714, %v715
        %v717 = vrot.slane %v716, 2
        %v718 = vadd.f32 %v716, %v717
        %v719 = vrot.slane %v718, 1
        %v720 = vadd.f32 %v718, %v719
        %v721 = vrcp.pop 8.0
        %v722 = vmul.f32 %v713, %v721
        %v723 = vmul.f32 %v720, %v721
        %vm726 = vcmask 1041409
        %v727 = vsel %vm726, %v723, %v722
        %vm729 = vcmask 123904
        %730 = vst.msk [vmem:[%s207] sm:$0x3] %vm729, %v727
        %s731 = sand.u32 %s120, 1
        %s732 = scalar_lea.sflag [#allocation3], %s731
        %s733 = sand.u32 %s120, 1
        %s734 = smul.addr %s733, 2
        %s735 = scalar_lea.vmem [#allocation2], %s734
        // Predicated region
        $region37: #{tpu_custom_call.1} parent=35 // pred_check
          %p736 = pneg %p130
        $region38: #{tpu_custom_call.1} parent=35 // pred_check_branch
          %738 = sbr.rel (%p736) target = $region40
        $region39: #{tpu_custom_call.1} parent=35 // pred_region
          %s740 = ssub.s32 32, 32
          %741 = vsyncadd %s732, %s740
          %s742 = smul.addr %s18, 32
          %s743 = scalar_lea.hbm %s4, %s742
          %s745 = sshll.u32 %s735, 4
          %s746 = int_to_ptr.vmem [resolvable:$true] %s745
          %748 = dma.vmem_to_hbm [thread:$0]  %s746, 32, %s743, %s732
        $region40: #{tpu_custom_call.1} parent=35 // pred_fallthru
          _
      $region36: #{tpu_custom_call.1} parent=5 // pred_fallthru
        _
      %p749 = scmp.le.s32.totalorder 2, %s13
      // Predicated region
      $region41: #{tpu_custom_call.1} parent=5 // pred_check
        %p750 = pneg %p749
      $region42: #{tpu_custom_call.1} parent=5 // pred_check_branch
        %752 = sbr.rel (%p750) target = $region44
      $region43: #{tpu_custom_call.1} parent=5 // pred_region
        %s753 = ssub.s32 %s13, 2
        // Predicated region
        $region45: #{tpu_custom_call.1} parent=43 // pred_check
          %p754 = pneg %p136
        $region46: #{tpu_custom_call.1} parent=43 // pred_check_branch
          %756 = sbr.rel (%p754) target = $region48
        $region47: #{tpu_custom_call.1} parent=43 // pred_region
          %s757 = sand.u32 %s121, 1
          %s758 = scalar_lea.sflag [#allocation3], %s757
          %s759 = sand.u32 %s121, 1
          %s760 = smul.addr %s759, 2
          %s761 = scalar_lea.vmem [#allocation2], %s760
          %762 = dma.done %s758, 32
        $region48: #{tpu_custom_call.1} parent=43 // pred_fallthru
          _
      $region44: #{tpu_custom_call.1} parent=5 // pred_fallthru
        _
    $region6: #{tpu_custom_call.1} parent=1 // loop_footer
      %s17 = sadd.s32 1, %s13
    $region7: #{tpu_custom_call.1} parent=1 // loop_footer_branch
      %12 = sbr.rel target = $region3
    $region8: #{tpu_custom_call.1} parent=1 // loop_exit
      _
    %763 = vsyncpa [#allocation3], 1
    %s764 = scalar_lea.sflag [#allocation3], 1
    %765 = vsyncpa %s764, 1

</llo_original>
